<compile_context>
chip_gen: v7x
topology: tpu7x:2x2x1
jax: 0.10.0
libtpu: 0.0.40
codegen_flags: <defaults>
</compile_context>

<pallas_src>
import functools

import jax
import jax.numpy as jnp
import numpy as np
from jax import lax
from jax.experimental import pallas as pl
from jax.experimental.pallas import tpu as pltpu

D_MODEL = 128
N_HEADS = 8
HEAD_DIM = D_MODEL // N_HEADS          # 16
Q4 = HEAD_DIM // 4                     # 4  (RoPE quarter width)
SCALING = float(HEAD_DIM) ** (-0.5)

# Tile caps (working sets stay well inside v7x's 64 MiB VMEM; v5e/v6e trivially).
LIN_TM_CAP = 1024
ATTN_TQ_CAP = 256
ATTN_TK_CAP = 1024

NEG_FLOOR = -1e30   # finite masked-score fill / running-max init (no inf-inf NaNs)


def _pick_tile(n, cap):
    """Full extent if it fits under the cap, else the largest divisor of n that
    is <= cap and a multiple of 8 (keeps the (8,128) block constraint)."""
    if n <= cap:
        return n
    for t in range(cap, 7, -1):
        if n % t == 0 and t % 8 == 0:
            return t
    return n


# ---------------------------------------------------------------------------
# Pallas kernels
# ---------------------------------------------------------------------------
def _linear_kernel(x_ref, w_ref, b_ref, o_ref):
    acc = jnp.dot(x_ref[...], w_ref[...], preferred_element_type=jnp.float32)
    o_ref[...] = (acc + b_ref[...]).astype(o_ref.dtype)


def _linear_rope_kernel(x_ref, w_ref, b_ref, cos_ref, sin_ref, o_ref):
    """y = x @ w + b, then full-width RoPE:  out = y*cos + y_swap*sin.

    cos/sin are pre-structured (rows, 128) tables (per 16-lane head:
    cos|cos|1 and +sin|-sin|0), so the rotation is 2 lane rolls + 1 lane
    select + 2 full-width FMAs instead of 24 narrow slices and a 24-way concat.
    """
    y = jnp.dot(x_ref[...], w_ref[...], preferred_element_type=jnp.float32) + b_ref[...]
    y_up = jnp.roll(y, -Q4, axis=-1)     # lane i -> y[i + Q4]  (right quarter)
    y_dn = jnp.roll(y, Q4, axis=-1)      # lane i -> y[i - Q4]  (left quarter)
    lane = lax.broadcasted_iota(jnp.int32, (1, y.shape[-1]), 1)
    y_swap = jnp.where((lane % HEAD_DIM) < Q4, y_up, y_dn)
    o_ref[...] = (y * cos_ref[...] + y_swap * sin_ref[...]).astype(o_ref.dtype)


def _attention_kernel(q_ref, k_ref, v_ref, wo_ref, bo_ref, o_ref,
                      m_sc, l_sc, acc_sc,
                      *, n_time_bins, n_electrodes, l_kv):
    ki = pl.program_id(2)
    tq = q_ref.shape[0]
    tk = k_ref.shape[0]

    @pl.when(ki == 0)
    def _init():
        m_sc[...] = jnp.full_like(m_sc, NEG_FLOOR)
        l_sc[...] = jnp.zeros_like(l_sc)
        acc_sc[...] = jnp.zeros_like(acc_sc)

    # Causal (time-bin) mask from 1-D iotas: O(tq + tk) div/mod, one broadcast
    # compare.  Flatten order (n_samples, n_time_bins, n_electrodes) gives
    # t = (idx // E) % T.  Masked scores get a finite floor (never -inf).
    q_rows = pl.program_id(1) * tq + lax.broadcasted_iota(jnp.int32, (tq, 1), 0)
    k_cols = ki * tk + lax.broadcasted_iota(jnp.int32, (1, tk), 1)
    t_q = (q_rows // n_electrodes) % n_time_bins
    t_k = (k_cols // n_electrodes) % n_time_bins
    masked = (t_k > t_q) | (k_cols >= l_kv)                      # (tq, tk)

    q = q_ref[...].astype(jnp.float32)                           # (tq, D); scaling pre-folded into wq/bq
    kt = k_ref[...].astype(jnp.float32).T                        # (D, tk): ONE wide relayout per step
    v = v_ref[...].astype(jnp.float32)                           # (tk, D)

    m_prev = m_sc[...]                                           # (tq, H)
    l_prev = l_sc[...]                                           # (tq, H)

    m_cols, l_cols, alpha_cols, pv_cols = [], [], [], []
    for h in range(N_HEADS):
        lo, hi = h * HEAD_DIM, (h + 1) * HEAD_DIM
        s = jnp.dot(q[:, lo:hi], kt[lo:hi, :],                   # (tq, tk)
                    preferred_element_type=jnp.float32)
        s = jnp.where(masked, NEG_FLOOR, s)
        m_h_prev = m_prev[:, h:h + 1]                            # (tq, 1)
        m_h = jnp.maximum(m_h_prev, jnp.max(s, axis=-1, keepdims=True))
        alpha_h = jnp.exp(m_h_prev - m_h)
        p = jnp.exp(s - m_h)
        l_cols.append(alpha_h * l_prev[:, h:h + 1]
                      + jnp.sum(p, axis=-1, keepdims=True))
        m_cols.append(m_h)
        alpha_cols.append(jnp.broadcast_to(alpha_h, (tq, HEAD_DIM)))
        pv_cols.append(jnp.dot(p, v[:, lo:hi],
                               preferred_element_type=jnp.float32))

    # Lane-dense online-softmax state update (full-width rescale, one store).
    m_sc[...] = jnp.concatenate(m_cols, axis=-1)                 # (tq, H)
    l_sc[...] = jnp.concatenate(l_cols, axis=-1)                 # (tq, H)
    alpha_full = jnp.concatenate(alpha_cols, axis=-1)            # (tq, D)
    pv_full = jnp.concatenate(pv_cols, axis=-1)                  # (tq, D)
    acc_sc[...] = alpha_full * acc_sc[...] + pv_full

    @pl.when(ki == pl.num_programs(2) - 1)
    def _finalize():
        l = l_sc[...]                                            # (tq, H)
        inv = pl.reciprocal(jnp.where(l == 0.0, 1.0, l), approx=False)
        inv = jnp.where(l == 0.0, 0.0, inv)                      # PyTorch NaN->0 parity
        inv_full = jnp.concatenate(
            [jnp.broadcast_to(inv[:, h:h + 1], (tq, HEAD_DIM))
             for h in range(N_HEADS)], axis=-1)                  # (tq, D)
        attn_out = acc_sc[...] * inv_full
        # Fused output projection: (tq,128) @ (128,128) + bias, lane-dense store.
        out = jnp.dot(attn_out, wo_ref[...].astype(jnp.float32),
                      preferred_element_type=jnp.float32) + bo_ref[...]
        o_ref[...] = out.astype(o_ref.dtype)


# ---------------------------------------------------------------------------
# pallas_call wrappers
# ---------------------------------------------------------------------------
def linear(x2d, w, b, *, cos_rows=None, sin_rows=None):
    """y = x @ w + b on row tiles; if cos/sin given, RoPE is fused (full-width)."""
    n, d = x2d.shape
    dout = w.shape[1]
    tm = _pick_tile(n, LIN_TM_CAP)

    x_spec = pl.BlockSpec((tm, d), lambda i: (i, 0))
    w_spec = pl.BlockSpec((d, dout), lambda i: (0, 0))           # resident across steps
    b_spec = pl.BlockSpec((1, dout), lambda i: (0, 0))
    o_spec = pl.BlockSpec((tm, dout), lambda i: (i, 0))

    if cos_rows is None:
        kernel = _linear_kernel
        inputs = (x2d, w, b.reshape(1, dout))
        in_specs = [x_spec, w_spec, b_spec]
    else:
        kernel = _linear_rope_kernel
        inputs = (x2d, w, b.reshape(1, dout), cos_rows, sin_rows)
        t_spec = pl.BlockSpec((tm, dout), lambda i: (i, 0))
        in_specs = [x_spec, w_spec, b_spec, t_spec, t_spec]

    return pl.pallas_call(
        kernel,
        out_shape=jax.ShapeDtypeStruct((n, dout), x2d.dtype),
        grid_spec=pltpu.PrefetchScalarGridSpec(
            num_scalar_prefetch=0, grid=(n // tm,),
            in_specs=in_specs, out_specs=o_spec),
        compiler_params=pltpu.CompilerParams(
            dimension_semantics=("parallel",)),
    )(*inputs)


def attention(q, k, v, wo, bo, *, n_time_bins, n_electrodes):
    """q, k, v: (B, L, 128) lane-dense; returns out_proj(softmax(qk^T)v): (B, Lq, 128)."""
    B, Lq, D = q.shape
    Lk = k.shape[1]
    tq = _pick_tile(Lq, ATTN_TQ_CAP)
    tk = _pick_tile(Lk, ATTN_TK_CAP)

    kern = functools.partial(
        _attention_kernel,
        n_time_bins=n_time_bins, n_electrodes=n_electrodes, l_kv=Lk)

    return pl.pallas_call(
        kern,
        out_shape=jax.ShapeDtypeStruct((B, Lq, D), q.dtype),
        grid_spec=pltpu.PrefetchScalarGridSpec(
            num_scalar_prefetch=0,
            grid=(B, Lq // tq, Lk // tk),                 # reduction (Lk) axis last
            in_specs=[
                pl.BlockSpec((None, tq, D), lambda b, i, j: (b, i, 0)),
                pl.BlockSpec((None, tk, D), lambda b, i, j: (b, j, 0)),
                pl.BlockSpec((None, tk, D), lambda b, i, j: (b, j, 0)),
                pl.BlockSpec((D, D), lambda b, i, j: (0, 0)),     # wo resident (64 KiB)
                pl.BlockSpec((1, D), lambda b, i, j: (0, 0)),     # bo resident
            ],
            out_specs=pl.BlockSpec((None, tq, D), lambda b, i, j: (b, i, 0)),
            scratch_shapes=[
                pltpu.VMEM((tq, N_HEADS), jnp.float32),           # running max (lane-dense)
                pltpu.VMEM((tq, N_HEADS), jnp.float32),           # running denom
                pltpu.VMEM((tq, D_MODEL), jnp.float32),           # running PV acc (heads on lanes)
            ]),
        compiler_params=pltpu.CompilerParams(
            dimension_semantics=("parallel", "parallel", "arbitrary"),
            vmem_limit_bytes=48 * 1024 * 1024),                   # v7x-safe cap
    )(q, k, v, wo, bo.reshape(1, D))


# ---------------------------------------------------------------------------
# Forward pass (Pallas path)
# ---------------------------------------------------------------------------
def rope_full_tables(cos_buf, sin_buf, n_rows, T, E):
    """Per-row 128-wide RoPE tables.

    For each 16-lane head: cos table = [cos, cos, 1*8], sin table =
    [+sin, -sin, 0*8]; rows follow the (B, S, T, E) flatten order so
    t = (row // E) % T.
    """
    cos_t = cos_buf[0, 0, :T, 0, 0, :].astype(jnp.float32)        # (T, Q4)
    sin_t = sin_buf[0, 0, :T, 0, 0, :].astype(jnp.float32)
    ones = jnp.ones((T, HEAD_DIM - 2 * Q4), jnp.float32)
    zeros = jnp.zeros((T, HEAD_DIM - 2 * Q4), jnp.float32)
    cos16 = jnp.concatenate([cos_t, cos_t, ones], axis=-1)        # (T, 16)
    sin16 = jnp.concatenate([sin_t, -sin_t, zeros], axis=-1)      # (T, 16)
    cos128 = jnp.tile(cos16, (1, N_HEADS))                        # (T, 128)
    sin128 = jnp.tile(sin16, (1, N_HEADS))
    t_idx = (jnp.arange(n_rows) // E) % T
    return cos128[t_idx], sin128[t_idx]                           # (n_rows, 128) each


def rope_mha_forward(query, key, value, params, cos_buf, sin_buf):
    B, Sq, T, E, D = query.shape
    Sk = key.shape[1]
    Nq = B * Sq * T * E
    Nk = B * Sk * T * E

    cos_q, sin_q = rope_full_tables(cos_buf, sin_buf, Nq, T, E)
    cos_k, sin_k = rope_full_tables(cos_buf, sin_buf, Nk, T, E)

    # Fold the 1/sqrt(head_dim) scaling into the q projection once
    # (RoPE is linear, so scaling before/after the rotation is identical).
    wq = params["wq"] * SCALING
    bq = params["bq"] * SCALING

    # Projections with RoPE fused into the q/k epilogues.
    q = linear(query.reshape(Nq, D), wq, bq, cos_rows=cos_q, sin_rows=sin_q)
    k = linear(key.reshape(Nk, D), params["wk"], params["bk"],
               cos_rows=cos_k, sin_rows=sin_k)
    v = linear(value.reshape(Nk, D), params["wv"], params["bv"])

    # Natural lane-dense layout (B, L, 128); no HBM head transposes.
    q = q.reshape(B, Sq * T * E, D)
    k = k.reshape(B, Sk * T * E, D)
    v = v.reshape(B, Sk * T * E, D)

    # Attention with the output projection fused into the finalize step.
    out = attention(q, k, v, params["wo"], params["bo"],
                    n_time_bins=T, n_electrodes=E)
    return out.reshape(B, Sq, T, E, D)


# ---------------------------------------------------------------------------
# Pure-JAX reference (mirrors the PyTorch forward, incl. dense mask + buffers)
# ---------------------------------------------------------------------------
def build_rope_tables(max_t, head_dim):
    q4 = head_dim // 4
    inv_freq = 1.0 / (10000.0 ** (jnp.arange(q4, dtype=jnp.float32) / q4))
    t = jnp.arange(max_t, dtype=jnp.float32)
    ang = t[:, None] * inv_freq[None, :]
    cos = jnp.cos(ang)[None, None, :, None, None, :]
    sin = jnp.sin(ang)[None, None, :, None, None, :]
    return cos, sin


def apply_rope_ref(x, cos, sin):
    hd = x.shape[-1]
    q4 = hd // 4
    x_left = x[..., :q4]
    x_right = x[..., q4:hd // 2]
    x_unchanged = x[..., hd // 2:]
    x_right_rot = x_right * cos - x_left * sin
    x_left_rot = x_left * cos + x_right * sin
    return jnp.concatenate([x_left_rot, x_right_rot, x_unchanged], axis=-1)


def build_mask_bias_ref(causal_mask, Sq, Sk, T, E):
    causal = causal_mask[:T, :T]
    mask6 = jnp.broadcast_to(causal[None, :, None, None, :, None],
                             (Sq, T, E, Sk, T, E))
    return jnp.where(mask6.reshape(Sq * T * E, Sk * T * E),
                     -jnp.inf, 0.0).astype(jnp.float32)


def ref_forward(query, key, value, params, cos, sin, causal_mask):
    B, Sq, T, E, D = query.shape
    Sk = key.shape[1]
    H, hd = N_HEADS, HEAD_DIM

    q = (query.reshape(-1, D) @ params["wq"] + params["bq"]).reshape(B, Sq, T, E, H, hd)
    k = (key.reshape(-1, D) @ params["wk"] + params["bk"]).reshape(B, Sk, T, E, H, hd)
    v = (value.reshape(-1, D) @ params["wv"] + params["bv"]).reshape(B, Sk, T, E, H, hd)

    q = apply_rope_ref(q, cos[:, :, :T], sin[:, :, :T])
    k = apply_rope_ref(k, cos[:, :, :T], sin[:, :, :T])

    q = q.transpose(0, 4, 1, 2, 3, 5).reshape(B, H, Sq * T * E, hd)
    k = k.transpose(0, 4, 1, 2, 3, 5).reshape(B, H, Sk * T * E, hd)
    v = v.transpose(0, 4, 1, 2, 3, 5).reshape(B, H, Sk * T * E, hd)

    s = jnp.einsum("bhqd,bhkd->bhqk", q, k) * SCALING
    bias = build_mask_bias_ref(causal_mask, Sq, Sk, T, E)
    s = s + bias[None, None]
    attn = jax.nn.softmax(s, axis=-1)
    attn = jnp.where(jnp.isnan(attn), 0.0, attn)
    out = jnp.einsum("bhqk,bhkd->bhqd", attn, v)
    out = out.reshape(B, H, Sq, T, E, hd).transpose(0, 2, 3, 4, 1, 5).reshape(B, Sq, T, E, D)
    out = (out.reshape(-1, D) @ params["wo"] + params["bo"]).reshape(B, Sq, T, E, D)
    return out


# ---------------------------------------------------------------------------
if __name__ == "__main__":
    B, S, T, E = 2, 2, 4, 4          # batch, n_samples, n_time_bins, n_electrodes
    MAX_T = 12                       # config['max_n_time_bins']

    key0 = jax.random.PRNGKey(0)
    ks = jax.random.split(key0, 12)

    # deterministic "weights" (stored as (in, out), i.e. PyTorch W.T)
    params = {
        "wq": 0.02 * jax.random.normal(ks[0], (D_MODEL, D_MODEL), jnp.float32),
        "bq": 0.02 * jax.random.normal(ks[1], (D_MODEL,), jnp.float32),
        "wk": 0.02 * jax.random.normal(ks[2], (D_MODEL, D_MODEL), jnp.float32),
        "bk": 0.02 * jax.random.normal(ks[3], (D_MODEL,), jnp.float32),
        "wv": 0.02 * jax.random.normal(ks[4], (D_MODEL, D_MODEL), jnp.float32),
        "bv": 0.02 * jax.random.normal(ks[5], (D_MODEL,), jnp.float32),
        "wo": 0.02 * jax.random.normal(ks[6], (D_MODEL, D_MODEL), jnp.float32),
        "bo": 0.02 * jax.random.normal(ks[7], (D_MODEL,), jnp.float32),
    }

    # precomputed buffers (module's registered buffers, built synthetically)
    cos, sin = build_rope_tables(MAX_T, HEAD_DIM)                      # (1,1,12,1,1,4)
    causal_mask = jnp.triu(jnp.ones((MAX_T, MAX_T), dtype=bool), k=1)  # True = masked

    query = jax.random.normal(ks[8], (B, S, T, E, D_MODEL), jnp.float32)
    key_in = jax.random.normal(ks[9], (B, S, T, E, D_MODEL), jnp.float32)
    value = jax.random.normal(ks[10], (B, S, T, E, D_MODEL), jnp.float32)

    out = jax.block_until_ready(
        rope_mha_forward(query, key_in, value, params, cos, sin))

    ref = jax.block_until_ready(
        ref_forward(query, key_in, value, params, cos, sin, causal_mask))
    np.testing.assert_allclose(np.asarray(out), np.asarray(ref), rtol=1e-4, atol=1e-4)

    print("KERNEL_OK")
</pallas_src>

<mosaic_0001>
module attributes {stable_mosaic.version = 11 : i64} {
  func.func @_linear_rope_kernel(%arg0: i32, %arg1: memref<64x128xf32, #tpu.memory_space<vmem>>, %arg2: memref<128x128xf32, #tpu.memory_space<vmem>>, %arg3: memref<1x128xf32, #tpu.memory_space<vmem>>, %arg4: memref<64x128xf32, #tpu.memory_space<vmem>>, %arg5: memref<64x128xf32, #tpu.memory_space<vmem>>, %arg6: memref<64x128xf32, #tpu.memory_space<vmem>>) attributes {dimension_semantics = [#tpu.dimension_semantics<parallel>], iteration_bounds = array<i64: 1>, scalar_prefetch = 0 : i64, scratch_operands = 0 : i64, tpu.core_type = #tpu.core_type<tc>, window_params = [{transform_indices = @transform_0, window_bounds = array<i64: 64, 128>}, {pipeline_mode = #tpu.pipeline_mode<synchronous>, transform_indices = @transform_1, window_bounds = array<i64: 128, 128>}, {pipeline_mode = #tpu.pipeline_mode<synchronous>, transform_indices = @transform_2, window_bounds = array<i64: 1, 128>}, {transform_indices = @transform_3, window_bounds = array<i64: 64, 128>}, {transform_indices = @transform_4, window_bounds = array<i64: 64, 128>}, {transform_indices = @transform_5, window_bounds = array<i64: 64, 128>}]} {
    %c0 = arith.constant 0 : index
    %c0_0 = arith.constant 0 : index
    %0 = vector.load %arg1[%c0, %c0_0] : memref<64x128xf32, #tpu.memory_space<vmem>>, vector<64x128xf32>
    %c0_1 = arith.constant 0 : index
    %c0_2 = arith.constant 0 : index
    %1 = vector.load %arg2[%c0_1, %c0_2] : memref<128x128xf32, #tpu.memory_space<vmem>>, vector<128x128xf32>
    %cst = arith.constant dense<0.000000e+00> : vector<64x128xf32>
    %2 = tpu.matmul %0, %1, %cst {dimension_numbers = #tpu.dot_dimension_numbers<[1], [0], [0], [1], [0, 0, 1, 1], [], []>} : vector<64x128xf32>, vector<128x128xf32>, vector<64x128xf32> -> vector<64x128xf32>
    %c0_3 = arith.constant 0 : index
    %c0_4 = arith.constant 0 : index
    %3 = vector.load %arg3[%c0_3, %c0_4] : memref<1x128xf32, #tpu.memory_space<vmem>>, vector<1x128xf32>
    %4 = vector.broadcast %3 : vector<1x128xf32> to vector<64x128xf32>
    %5 = arith.addf %2, %4 : vector<64x128xf32>
    %6 = vector.extract_strided_slice %5 {offsets = [0, 4], sizes = [64, 124], strides = [1, 1]} : vector<64x128xf32> to vector<64x124xf32>
    %7 = vector.extract_strided_slice %5 {offsets = [0, 0], sizes = [64, 4], strides = [1, 1]} : vector<64x128xf32> to vector<64x4xf32>
    %8 = tpu.concatenate %6, %7 in 1 : vector<64x124xf32>, vector<64x4xf32> -> vector<64x128xf32>
    %9 = vector.extract_strided_slice %5 {offsets = [0, 124], sizes = [64, 4], strides = [1, 1]} : vector<64x128xf32> to vector<64x4xf32>
    %10 = vector.extract_strided_slice %5 {offsets = [0, 0], sizes = [64, 124], strides = [1, 1]} : vector<64x128xf32> to vector<64x124xf32>
    %11 = tpu.concatenate %9, %10 in 1 : vector<64x4xf32>, vector<64x124xf32> -> vector<64x128xf32>
    %12 = tpu.iota {dimensions = array<i32: 1>} : vector<1x128xi32>
    %c16_i32 = arith.constant 16 : i32
    %c0_i32 = arith.constant 0 : i32
    %13 = arith.cmpi eq, %c16_i32, %c0_i32 : i32
    %c1_i32 = arith.constant 1 : i32
    %14 = arith.select %13, %c1_i32, %c16_i32 : i32
    %15 = vector.broadcast %14 : i32 to vector<1x128xi32>
    %16 = arith.remsi %12, %15 : vector<1x128xi32>
    %c0_i32_5 = arith.constant 0 : i32
    %17 = vector.broadcast %c0_i32_5 : i32 to vector<1x128xi32>
    %18 = arith.cmpi ne, %16, %17 : vector<1x128xi32>
    %c0_i32_6 = arith.constant 0 : i32
    %19 = vector.broadcast %c0_i32_6 : i32 to vector<1x128xi32>
    %20 = arith.cmpi slt, %16, %19 : vector<1x128xi32>
    %c0_i32_7 = arith.constant 0 : i32
    %21 = arith.cmpi slt, %14, %c0_i32_7 : i32
    %22 = vector.broadcast %21 : i1 to vector<1x128xi1>
    %23 = vector.broadcast %22 : vector<1x128xi1> to vector<1x128xi1>
    %24 = arith.xori %20, %23 : vector<1x128xi1>
    %25 = arith.andi %24, %18 : vector<1x128xi1>
    %26 = vector.broadcast %14 : i32 to vector<1x128xi32>
    %27 = arith.addi %16, %26 : vector<1x128xi32>
    %28 = arith.select %25, %27, %16 : vector<1x128xi1>, vector<1x128xi32>
    %c4_i32 = arith.constant 4 : i32
    %29 = vector.broadcast %c4_i32 : i32 to vector<1x128xi32>
    %30 = arith.cmpi slt, %28, %29 : vector<1x128xi32>
    %31 = vector.shape_cast %30 : vector<1x128xi1> to vector<1x128xi1>
    %32 = vector.broadcast %31 : vector<1x128xi1> to vector<64x128xi1>
    %33 = arith.select %32, %8, %11 : vector<64x128xi1>, vector<64x128xf32>
    %c0_8 = arith.constant 0 : index
    %c0_9 = arith.constant 0 : index
    %34 = vector.load %arg4[%c0_8, %c0_9] : memref<64x128xf32, #tpu.memory_space<vmem>>, vector<64x128xf32>
    %35 = arith.mulf %5, %34 : vector<64x128xf32>
    %c0_10 = arith.constant 0 : index
    %c0_11 = arith.constant 0 : index
    %36 = vector.load %arg5[%c0_10, %c0_11] : memref<64x128xf32, #tpu.memory_space<vmem>>, vector<64x128xf32>
    %37 = arith.mulf %33, %36 : vector<64x128xf32>
    %38 = arith.addf %35, %37 : vector<64x128xf32>
    %c0_12 = arith.constant 0 : index
    %c0_13 = arith.constant 0 : index
    %39 = vector.load %arg6[%c0_12, %c0_13] : memref<64x128xf32, #tpu.memory_space<vmem>>, vector<64x128xf32>
    tpu.vector_store %arg6[%c0_12, %c0_13], %38 {strides = array<i32>} : memref<64x128xf32, #tpu.memory_space<vmem>>, vector<64x128xf32>,
    return
  }
  func.func @transform_0(%arg0: i32) -> (i32, i32) {
    %c0_i32 = arith.constant 0 : i32
    %c0_i32_0 = arith.constant 0 : i32
    return %arg0, %c0_i32 : i32, i32
  }
  func.func @transform_1(%arg0: i32) -> (i32, i32) {
    %c0_i32 = arith.constant 0 : i32
    %c0_i32_0 = arith.constant 0 : i32
    %c0_i32_1 = arith.constant 0 : i32
    return %c0_i32, %c0_i32_0 : i32, i32
  }
  func.func @transform_2(%arg0: i32) -> (i32, i32) {
    %c0_i32 = arith.constant 0 : i32
    %c0_i32_0 = arith.constant 0 : i32
    %c0_i32_1 = arith.constant 0 : i32
    return %c0_i32, %c0_i32_0 : i32, i32
  }
  func.func @transform_3(%arg0: i32) -> (i32, i32) {
    %c0_i32 = arith.constant 0 : i32
    %c0_i32_0 = arith.constant 0 : i32
    return %arg0, %c0_i32 : i32, i32
  }
  func.func @transform_4(%arg0: i32) -> (i32, i32) {
    %c0_i32 = arith.constant 0 : i32
    %c0_i32_0 = arith.constant 0 : i32
    return %arg0, %c0_i32 : i32, i32
  }
  func.func @transform_5(%arg0: i32) -> (i32, i32) {
    %c0_i32 = arith.constant 0 : i32
    %c0_i32_0 = arith.constant 0 : i32
    return %arg0, %c0_i32 : i32, i32
  }
}

</mosaic_0001>

<llo_original>
// kernel: tpu_custom_call.1
$region0: #{tpu_custom_call.1}
  #allocation0 [shape = 'u32[]', space=smem, size = 0x4, offset = 0x4, fixed_abs, tag = 'smem constant byte address 0x4 - core index']
  #allocation1 [shape = 'u32[144,128]{1,0:T(1,128)}', space=vmem, size = 0x12000, scoped, tag = 'internal scratch']
  %s0 = inlined_call_operand.hbm [shape: f32[64,128], index: 0, kind: input, shape index: {}]
  %s1 = inlined_call_operand.hbm [shape: f32[128,128], index: 1, kind: input, shape index: {}]
  %s2 = inlined_call_operand.vmem [shape: f32[1,128], index: 2, kind: input, shape index: {}]
  %s3 = inlined_call_operand.hbm [shape: f32[64,128], index: 3, kind: input, shape index: {}]
  %s4 = inlined_call_operand.hbm [shape: f32[64,128], index: 4, kind: input, shape index: {}]
  %s5 = inlined_call_operand.hbm [shape: f32[64,128], index: 5, kind: output, shape index: {}]
  %s6 = sld [smem:[#allocation0]]
  $region46: #{tpu_custom_call.1} parent=0
    _
  %s8 = ssub.s32 1, %s6
  %s9 = scalar_select 0, %s8, %s6
  $region1: #{tpu_custom_call.1} parent=0
    #allocation2 [shape = 'u8[32768]{0}', space=vmem, size = 0x8000, scoped, tag = 'input window, operand 0, single buffered']
    #allocation3 [shape = 's32[1]{0}', space=sflag, size = 0x4, scoped, tag = 'scoped memory for tpu_custom_call.1']
    #allocation4 [shape = 's32[1]{0}', space=sflag, size = 0x4, scoped, tag = 'scoped memory for tpu_custom_call.1']
    #allocation5 [shape = 'u8[65536]{0}', space=vmem, size = 0x10000, scoped, tag = 'input window, operand 1, single buffered']
    #allocation6 [shape = 's32[1]{0}', space=sflag, size = 0x4, scoped, tag = 'scoped memory for tpu_custom_call.1']
    #allocation7 [shape = 'u8[32768]{0}', space=vmem, size = 0x8000, scoped, tag = 'input window, operand 3, single buffered']
    #allocation8 [shape = 'u8[32768]{0}', space=vmem, size = 0x8000, scoped, tag = 'input window, operand 4, single buffered']
    #allocation9 [shape = 's32[1]{0}', space=sflag, size = 0x4, scoped, tag = 'scoped memory for tpu_custom_call.1']
    #allocation10 [shape = 'u8[32768]{0}', space=vmem, size = 0x8000, scoped, tag = 'output window, operand 0, single buffered']
    %10 = vsyncpa [#allocation3], 0
    %11 = vsyncpa [#allocation6], 0
    %12 = vsyncpa [#allocation9], 0
    %13 = vsyncpa [#allocation4], 0
    // Predicated region
    $region2: #{tpu_custom_call.1} parent=1 // pred_check
      _
    $region3: #{tpu_custom_call.1} parent=1 // pred_check_branch
      %15 = sbr.rel (0) target = $region5
    $region4: #{tpu_custom_call.1} parent=1 // pred_region
      %s17 = ssub.s32 1024, 1024
      %18 = vsyncadd [#allocation3], %s17
      %s19 = sshll.u32 [#allocation2], 4
      %s20 = int_to_ptr.vmem [resolvable:$true] %s19
      %25 = dma.hbm_to_vmem [thread:$0]  %s0, 1024, %s20, [#allocation3], 128, 128, 8
    $region5: #{tpu_custom_call.1} parent=1 // pred_fallthru
      _
    // Predicated region
    $region6: #{tpu_custom_call.1} parent=1 // pred_check
      _
    $region7: #{tpu_custom_call.1} parent=1 // pred_check_branch
      %27 = sbr.rel (0) target = $region9
    $region8: #{tpu_custom_call.1} parent=1 // pred_region
      %s29 = ssub.s32 2048, 2048
      %30 = vsyncadd [#allocation6], %s29
      %s31 = sshll.u32 [#allocation5], 4
      %s32 = int_to_ptr.vmem [resolvable:$true] %s31
      %37 = dma.hbm_to_vmem [thread:$0]  %s1, 2048, %s32, [#allocation6], 128, 128, 8
    $region9: #{tpu_custom_call.1} parent=1 // pred_fallthru
      _
    // Predicated region
    $region10: #{tpu_custom_call.1} parent=1 // pred_check
      _
    $region11: #{tpu_custom_call.1} parent=1 // pred_check_branch
      %39 = sbr.rel (0) target = $region13
    $region12: #{tpu_custom_call.1} parent=1 // pred_region
      _
    $region13: #{tpu_custom_call.1} parent=1 // pred_fallthru
      _
    // Predicated region
    $region14: #{tpu_custom_call.1} parent=1 // pred_check
      _
    $region15: #{tpu_custom_call.1} parent=1 // pred_check_branch
      %41 = sbr.rel (0) target = $region17
    $region16: #{tpu_custom_call.1} parent=1 // pred_region
      %s43 = ssub.s32 1024, 1024
      %44 = vsyncadd [#allocation6], %s43
      %s45 = sshll.u32 [#allocation7], 4
      %s46 = int_to_ptr.vmem [resolvable:$true] %s45
      %51 = dma.hbm_to_vmem [thread:$0]  %s3, 1024, %s46, [#allocation6], 128, 128, 8
    $region17: #{tpu_custom_call.1} parent=1 // pred_fallthru
      _
    // Predicated region
    $region18: #{tpu_custom_call.1} parent=1 // pred_check
      _
    $region19: #{tpu_custom_call.1} parent=1 // pred_check_branch
      %53 = sbr.rel (0) target = $region21
    $region20: #{tpu_custom_call.1} parent=1 // pred_region
      %s55 = ssub.s32 1024, 1024
      %56 = vsyncadd [#allocation9], %s55
      %s57 = sshll.u32 [#allocation8], 4
      %s58 = int_to_ptr.vmem [resolvable:$true] %s57
      %63 = dma.hbm_to_vmem [thread:$0]  %s4, 1024, %s58, [#allocation9], 128, 128, 8
    $region21: #{tpu_custom_call.1} parent=1 // pred_fallthru
      _
    // Predicated region
    $region22: #{tpu_custom_call.1} parent=1 // pred_check
      _
    $region23: #{tpu_custom_call.1} parent=1 // pred_check_branch
      %65 = sbr.rel (0) target = $region25
    $region24: #{tpu_custom_call.1} parent=1 // pred_region
      %66 = dma.done [#allocation3], 1024
    $region25: #{tpu_custom_call.1} parent=1 // pred_fallthru
      _
    // Predicated region
    $region26: #{tpu_custom_call.1} parent=1 // pred_check
      _
    $region27: #{tpu_custom_call.1} parent=1 // pred_check_branch
      %68 = sbr.rel (0) target = $region29
    $region28: #{tpu_custom_call.1} parent=1 // pred_region
      %69 = dma.done [#allocation6], 2048
    $region29: #{tpu_custom_call.1} parent=1 // pred_fallthru
      _
    // Predicated region
    $region30: #{tpu_custom_call.1} parent=1 // pred_check
      _
    $region31: #{tpu_custom_call.1} parent=1 // pred_check_branch
      %71 = sbr.rel (0) target = $region33
    $region32: #{tpu_custom_call.1} parent=1 // pred_region
      %72 = dma.done [#allocation6], 1024
    $region33: #{tpu_custom_call.1} parent=1 // pred_fallthru
      _
    // Predicated region
    $region34: #{tpu_custom_call.1} parent=1 // pred_check
      _
    $region35: #{tpu_custom_call.1} parent=1 // pred_check_branch
      %74 = sbr.rel (0) target = $region37
    $region36: #{tpu_custom_call.1} parent=1 // pred_region
      %75 = dma.done [#allocation9], 1024
    $region37: #{tpu_custom_call.1} parent=1 // pred_fallthru
      _
    %v76 = vld [vmem:[#allocation2] sm:$0xff]
    %v77 = vld [vmem:[#allocation2 + $0x8] sm:$0xff]
    %v78 = vld [vmem:[#allocation2 + $0x10] sm:$0xff]
    %v79 = vld [vmem:[#allocation2 + $0x18] sm:$0xff]
    %v80 = vld [vmem:[#allocation2 + $0x20] sm:$0xff]
    %v81 = vld [vmem:[#allocation2 + $0x28] sm:$0xff]
    %v82 = vld [vmem:[#allocation2 + $0x30] sm:$0xff]
    %v83 = vld [vmem:[#allocation2 + $0x38] sm:$0xff]
    %v84 = vld [vmem:[#allocation5] sm:$0xff]
    %v85 = vld [vmem:[#allocation5 + $0x8] sm:$0xff]
    %v86 = vld [vmem:[#allocation5 + $0x10] sm:$0xff]
    %v87 = vld [vmem:[#allocation5 + $0x18] sm:$0xff]
    %v88 = vld [vmem:[#allocation5 + $0x20] sm:$0xff]
    %v89 = vld [vmem:[#allocation5 + $0x28] sm:$0xff]
    %v90 = vld [vmem:[#allocation5 + $0x30] sm:$0xff]
    %v91 = vld [vmem:[#allocation5 + $0x38] sm:$0xff]
    %v92 = vld [vmem:[#allocation5 + $0x40] sm:$0xff]
    %v93 = vld [vmem:[#allocation5 + $0x48] sm:$0xff]
    %v94 = vld [vmem:[#allocation5 + $0x50] sm:$0xff]
    %v95 = vld [vmem:[#allocation5 + $0x58] sm:$0xff]
    %v96 = vld [vmem:[#allocation5 + $0x60] sm:$0xff]
    %v97 = vld [vmem:[#allocation5 + $0x68] sm:$0xff]
    %v98 = vld [vmem:[#allocation5 + $0x70] sm:$0xff]
    %v99 = vld [vmem:[#allocation5 + $0x78] sm:$0xff]
    %v100 = vld [vmem:[%s2] sm:$0x1]
    %v102 = vlaneseq
    %v103 = vshrl.u32 %v102, 7
    %v104 = vsub.s32 0, %v103
    %v105 = vrot.slane %v100, %v104
    %107 = vmatprep.subr.mxu0 0.0
    %108 = vmatpush1.msra.mxu0 %v84
    %109 = vmatprep.subr.mxu0 0.0
    %110 = vmatpush1.msra.mxu0 %v85
    %111 = vmatprep.subr.mxu0 0.0
    %112 = vmatpush1.msra.mxu0 %v86
    %113 = vmatprep.subr.mxu0 0.0
    %114 = vmatpush1.msra.mxu0 %v87
    %115 = vmatprep.subr.mxu0 0.0
    %116 = vmatpush1.msra.mxu0 %v88
    %117 = vmatprep.subr.mxu0 0.0
    %118 = vmatpush1.msra.mxu0 %v89
    %119 = vmatprep.subr.mxu0 0.0
    %120 = vmatpush1.msra.mxu0 %v90
    %121 = vmatprep.subr.mxu0 0.0
    %122 = vmatpush1.msra.mxu0 %v91
    %123 = vmatprep.subr.mxu0 0.0
    %124 = vmatpush1.msra.mxu0 %v92
    %125 = vmatprep.subr.mxu0 0.0
    %126 = vmatpush1.msra.mxu0 %v93
    %127 = vmatprep.subr.mxu0 0.0
    %128 = vmatpush1.msra.mxu0 %v94
    %129 = vmatprep.subr.mxu0 0.0
    %130 = vmatpush1.msra.mxu0 %v95
    %131 = vmatprep.subr.mxu0 0.0
    %132 = vmatpush1.msra.mxu0 %v96
    %133 = vmatprep.subr.mxu0 0.0
    %134 = vmatpush1.msra.mxu0 %v97
    %135 = vmatprep.subr.mxu0 0.0
    %136 = vmatpush1.msra.mxu0 %v98
    %137 = vmatprep.subr.mxu0 0.0
    %138 = vmatpush1.msra.mxu0 %v99
    %139 = vmatprep.subr.mxu0 0.0
    %140 = vmatpush1.msra.mxu0 0.0
    %141 = vmatprep.subr.mxu0 0.0
    %142 = vmatpush1.msra.mxu0 0.0
    %143 = vmatprep.subr.mxu0 0.0
    %144 = vmatpush1.msra.mxu0 0.0
    %145 = vmatprep.subr.mxu0 0.0
    %146 = vmatpush1.msra.mxu0 0.0
    %147 = vmatprep.subr.mxu0 0.0
    %148 = vmatpush1.msra.mxu0 0.0
    %149 = vmatprep.subr.mxu0 0.0
    %150 = vmatpush1.msra.mxu0 0.0
    %151 = vmatprep.subr.mxu0 0.0
    %152 = vmatpush1.msra.mxu0 0.0
    %153 = vmatprep.subr.mxu0 0.0
    %154 = vmatpush1.msra.mxu0 0.0
    %155 = vmatprep.subr.mxu0 0.0
    %156 = vmatpush1.msra.mxu0 0.0
    %157 = vmatprep.subr.mxu0 0.0
    %158 = vmatpush1.msra.mxu0 0.0
    %159 = vmatprep.subr.mxu0 0.0
    %160 = vmatpush1.msra.mxu0 0.0
    %161 = vmatprep.subr.mxu0 0.0
    %162 = vmatpush1.msra.mxu0 0.0
    %163 = vmatprep.subr.mxu0 0.0
    %164 = vmatpush1.msra.mxu0 0.0
    %165 = vmatprep.subr.mxu0 0.0
    %166 = vmatpush1.msra.mxu0 0.0
    %167 = vmatprep.subr.mxu0 0.0
    %168 = vmatpush1.msra.mxu0 0.0
    %169 = vmatprep.subr.mxu0 0.0
    %170 = vmatpush1.msra.mxu0 0.0
    %171 = vmatprep.mubr.f32.mxu0 0.0
    %172 = vmatmul.mubr.f32.gmra.mrb[0].mxu0 %v76
    %v173 = vpop.f32.mrb[0].mxu0
    %v174 = vadd.f32 %v105, %v173
    %v175 = vpop.f32.mrb[0].mxu0
    %176 = vmatprep.mubr.f32.mxu0 0.0
    %177 = vmatmul.mubr.f32.gmra.mrb[0].mxu0 %v77
    %v178 = vpop.f32.mrb[0].mxu0
    %v179 = vadd.f32 %v105, %v178
    %v180 = vpop.f32.mrb[0].mxu0
    %181 = vmatprep.mubr.f32.mxu0 0.0
    %182 = vmatmul.mubr.f32.gmra.mrb[0].mxu0 %v78
    %v183 = vpop.f32.mrb[0].mxu0
    %v184 = vadd.f32 %v105, %v183
    %v185 = vpop.f32.mrb[0].mxu0
    %186 = vmatprep.mubr.f32.mxu0 0.0
    %187 = vmatmul.mubr.f32.gmra.mrb[0].mxu0 %v79
    %v188 = vpop.f32.mrb[0].mxu0
    %v189 = vadd.f32 %v105, %v188
    %v190 = vpop.f32.mrb[0].mxu0
    %191 = vmatprep.mubr.f32.mxu0 0.0
    %192 = vmatmul.mubr.f32.gmra.mrb[0].mxu0 %v80
    %v193 = vpop.f32.mrb[0].mxu0
    %v194 = vadd.f32 %v105, %v193
    %v195 = vpop.f32.mrb[0].mxu0
    %196 = vmatprep.mubr.f32.mxu0 0.0
    %197 = vmatmul.mubr.f32.gmra.mrb[0].mxu0 %v81
    %v198 = vpop.f32.mrb[0].mxu0
    %v199 = vadd.f32 %v105, %v198
    %v200 = vpop.f32.mrb[0].mxu0
    %201 = vmatprep.mubr.f32.mxu0 0.0
    %202 = vmatmul.mubr.f32.gmra.mrb[0].mxu0 %v82
    %v203 = vpop.f32.mrb[0].mxu0
    %v204 = vadd.f32 %v105, %v203
    %v205 = vpop.f32.mrb[0].mxu0
    %206 = vmatprep.mubr.f32.mxu0 0.0
    %207 = vmatmul.mubr.f32.gmra.mrb[0].mxu0 %v83
    %v208 = vpop.f32.mrb[0].mxu0
    %v209 = vadd.f32 %v105, %v208
    %v210 = vpop.f32.mrb[0].mxu0
    %211 = vdwg.mxu0
    %220 = vrot.lane.b32.xlu0 %v174, 124
    %v221 = vpop.permute.xlu0 %220
    %222 = vrot.lane.b32.xlu0 %v179, 124
    %v223 = vpop.permute.xlu0 %222
    %224 = vrot.lane.b32.xlu0 %v184, 124
    %v225 = vpop.permute.xlu0 %224
    %226 = vrot.lane.b32.xlu0 %v189, 124
    %v227 = vpop.permute.xlu0 %226
    %228 = vrot.lane.b32.xlu0 %v194, 124
    %v229 = vpop.permute.xlu0 %228
    %230 = vrot.lane.b32.xlu0 %v199, 124
    %v231 = vpop.permute.xlu0 %230
    %232 = vrot.lane.b32.xlu0 %v204, 124
    %v233 = vpop.permute.xlu0 %232
    %234 = vrot.lane.b32.xlu0 %v209, 124
    %v235 = vpop.permute.xlu0 %234
    %244 = vrot.lane.b32.xlu0 %v174, 4
    %v245 = vpop.permute.xlu0 %244
    %246 = vrot.lane.b32.xlu0 %v179, 4
    %v247 = vpop.permute.xlu0 %246
    %248 = vrot.lane.b32.xlu0 %v184, 4
    %v249 = vpop.permute.xlu0 %248
    %250 = vrot.lane.b32.xlu0 %v189, 4
    %v251 = vpop.permute.xlu0 %250
    %252 = vrot.lane.b32.xlu0 %v194, 4
    %v253 = vpop.permute.xlu0 %252
    %254 = vrot.lane.b32.xlu0 %v199, 4
    %v255 = vpop.permute.xlu0 %254
    %256 = vrot.lane.b32.xlu0 %v204, 4
    %v257 = vpop.permute.xlu0 %256
    %258 = vrot.lane.b32.xlu0 %v209, 4
    %v259 = vpop.permute.xlu0 %258
    %v268 = vlaneseq
    %v269 = vand.u32 %v268, 127
    %vm270 = vcmp.lt.s32.totalorder %v269, 0
    %v271 = vsub.s32 0, %v269
    %v272 = vsel %vm270, %v271, %v269
    %v273 = vshrl.u32 %v272, 4
    %v274 = vand.u32 %v272, 15
    %v275 = vsub.s32 0, %v274
    %v276 = vsel %vm270, %v275, %v274
    %vm277 = vcmp.ne.s32.totalorder %v276, 0
    %vm278 = vcmp.lt.s32.totalorder %v276, 0
    %vm279 = vmand %vm278, %vm277
    %v280 = vadd.s32 %v276, 16
    %v281 = vsel %vm279, %v280, %v276
    %vm282 = vcmp.lt.s32.totalorder %v281, 4
    %v283 = vsel %vm282, 1, 0
    %vm284 = vcmp.eq.s32.totalorder %v283, 1
    %v285 = vsel %vm284, %v221, %v245
    %v286 = vsel %vm284, %v223, %v247
    %v287 = vsel %vm284, %v225, %v249
    %v288 = vsel %vm284, %v227, %v251
    %v289 = vsel %vm284, %v229, %v253
    %v290 = vsel %vm284, %v231, %v255
    %v291 = vsel %vm284, %v233, %v257
    %v292 = vsel %vm284, %v235, %v259
    %v293 = vld [vmem:[#allocation7] sm:$0xff]
    %v294 = vld [vmem:[#allocation7 + $0x8] sm:$0xff]
    %v295 = vld [vmem:[#allocation7 + $0x10] sm:$0xff]
    %v296 = vld [vmem:[#allocation7 + $0x18] sm:$0xff]
    %v297 = vld [vmem:[#allocation7 + $0x20] sm:$0xff]
    %v298 = vld [vmem:[#allocation7 + $0x28] sm:$0xff]
    %v299 = vld [vmem:[#allocation7 + $0x30] sm:$0xff]
    %v300 = vld [vmem:[#allocation7 + $0x38] sm:$0xff]
    %v301 = vmul.f32 %v174, %v293
    %v302 = vmul.f32 %v179, %v294
    %v303 = vmul.f32 %v184, %v295
    %v304 = vmul.f32 %v189, %v296
    %v305 = vmul.f32 %v194, %v297
    %v306 = vmul.f32 %v199, %v298
    %v307 = vmul.f32 %v204, %v299
    %v308 = vmul.f32 %v209, %v300
    %v309 = vld [vmem:[#allocation8] sm:$0xff]
    %v310 = vld [vmem:[#allocation8 + $0x8] sm:$0xff]
    %v311 = vld [vmem:[#allocation8 + $0x10] sm:$0xff]
    %v312 = vld [vmem:[#allocation8 + $0x18] sm:$0xff]
    %v313 = vld [vmem:[#allocation8 + $0x20] sm:$0xff]
    %v314 = vld [vmem:[#allocation8 + $0x28] sm:$0xff]
    %v315 = vld [vmem:[#allocation8 + $0x30] sm:$0xff]
    %v316 = vld [vmem:[#allocation8 + $0x38] sm:$0xff]
    %v317 = vmul.f32 %v285, %v309
    %v318 = vmul.f32 %v286, %v310
    %v319 = vmul.f32 %v287, %v311
    %v320 = vmul.f32 %v288, %v312
    %v321 = vmul.f32 %v289, %v313
    %v322 = vmul.f32 %v290, %v314
    %v323 = vmul.f32 %v291, %v315
    %v324 = vmul.f32 %v292, %v316
    %v325 = vadd.f32 %v301, %v317
    %v326 = vadd.f32 %v302, %v318
    %v327 = vadd.f32 %v303, %v319
    %v328 = vadd.f32 %v304, %v320
    %v329 = vadd.f32 %v305, %v321
    %v330 = vadd.f32 %v306, %v322
    %v331 = vadd.f32 %v307, %v323
    %v332 = vadd.f32 %v308, %v324
    %333 = vst [vmem:[#allocation10] sm:$0xff] %v325
    %334 = vst [vmem:[#allocation10 + $0x8] sm:$0xff] %v326
    %335 = vst [vmem:[#allocation10 + $0x10] sm:$0xff] %v327
    %336 = vst [vmem:[#allocation10 + $0x18] sm:$0xff] %v328
    %337 = vst [vmem:[#allocation10 + $0x20] sm:$0xff] %v329
    %338 = vst [vmem:[#allocation10 + $0x28] sm:$0xff] %v330
    %339 = vst [vmem:[#allocation10 + $0x30] sm:$0xff] %v331
    %340 = vst [vmem:[#allocation10 + $0x38] sm:$0xff] %v332
    // Predicated region
    $region38: #{tpu_custom_call.1} parent=1 // pred_check
      _
    $region39: #{tpu_custom_call.1} parent=1 // pred_check_branch
      %342 = sbr.rel (0) target = $region41
    $region40: #{tpu_custom_call.1} parent=1 // pred_region
      %s344 = ssub.s32 1024, 1024
      %345 = vsyncadd [#allocation4], %s344
      %s346 = sshll.u32 [#allocation10], 4
      %s347 = int_to_ptr.vmem [resolvable:$true] %s346
      %352 = dma.vmem_to_hbm [thread:$0]  %s347, 1024, %s5, [#allocation4], 128, 128, 8
    $region41: #{tpu_custom_call.1} parent=1 // pred_fallthru
      _
    // Predicated region
    $region42: #{tpu_custom_call.1} parent=1 // pred_check
      _
    $region43: #{tpu_custom_call.1} parent=1 // pred_check_branch
      %354 = sbr.rel (0) target = $region45
    $region44: #{tpu_custom_call.1} parent=1 // pred_region
      %355 = dma.done [#allocation4], 1024
    $region45: #{tpu_custom_call.1} parent=1 // pred_fallthru
      _
    %356 = vsyncpa [#allocation3], 1
    %357 = vsyncpa [#allocation6], 1
    %358 = vsyncpa [#allocation9], 1
    %359 = vsyncpa [#allocation4], 1

</llo_original>
